<compile_context>
chip_gen: v7x
topology: tpu7x:2x2x1
jax: 0.10.0
libtpu: 0.0.40
codegen_flags: <defaults>
</compile_context>

<pallas_src>
import numpy as np
import jax
import jax.numpy as jnp
from jax.experimental import pallas as pl
from jax.experimental.pallas import tpu as pltpu


def _round_up(n: int, m: int) -> int:
    return ((n + m - 1) // m) * m


def _cycle_embedding_kernel(band_ref,            # scalar-prefetch: [n_tiles] int32 band block offsets
                            eps_ref,             # SMEM (1,1) f32
                            cid_row_ref,         # VMEM (tile_p, 1)   int32  row-tile cycle ids
                            cid_col_ref,         # VMEM (1, band_bw)  int32  column-band cycle ids
                            x_local_ref,         # VMEM (tile_p, c_pad) f32  local rows (exact)
                            x_band_ref,          # VMEM (band_bw, c_pad) bf16 column band of x
                            out_ref,             # VMEM (tile_p, c_pad) f32
                            acc_ref):            # VMEM (tile_p, c_pad) f32 scratch accumulator
    del band_ref  # only used inside the index_maps
    k = pl.program_id(1)

    @pl.when(k == 0)
    def _init():
        acc_ref[...] = jnp.zeros_like(acc_ref)

    # Same-cycle 0/1 mask built on the VPU — never streamed from HBM.
    eq = cid_row_ref[...] == cid_col_ref[...]                 # [tile_p, band_bw] bool
    mask = jnp.where(eq, 1.0, 0.0).astype(jnp.bfloat16)

    # bf16 x bf16 MXU matmul, f32 accumulation (no f32 upcast of operands).
    acc_ref[...] += jnp.dot(mask, x_band_ref[...],
                            preferred_element_type=jnp.float32)

    @pl.when(k == pl.num_programs(1) - 1)
    def _finalize():
        eps = eps_ref[0, 0]
        out_ref[...] = (1.0 + eps) * x_local_ref[...] + acc_ref[...]


def cycle_embedding(x, pos2node, cycle_id, num_cycles, emb_table, epsilon,
                    *, tile_p=256, band_bw=128):
    """x: [N] int node labels; pos2node: [P] node index of each (cycle, slot);
    cycle_id: [P] cycle index of each slot (static graph structure, concrete).
    Returns [P, C] float32.  `num_cycles` kept for API parity."""
    del num_cycles
    P = int(pos2node.shape[0])
    C = int(emb_table.shape[1])

    # ---- plain-JAX glue: embedding lookup is a real gather, not a matmul -----
    local = emb_table[x][pos2node].astype(jnp.float32)        # [P, C]

    # ---- static tiling / band layout (cycle structure is host-concrete) ------
    tile_p = _round_up(min(tile_p, _round_up(P, 128)), 128)
    p_pad = _round_up(P, tile_p)
    c_pad = _round_up(C, 128)                                  # lane-dense stores
    n_tiles = p_pad // tile_p

    cid_np = np.asarray(jax.device_get(cycle_id)).astype(np.int32)
    starts = np.flatnonzero(np.r_[True, cid_np[1:] != cid_np[:-1]])
    contiguous = np.unique(cid_np).size == starts.size
    band_start = np.zeros((n_tiles,), np.int32)
    if contiguous:
        # Each cycle occupies a contiguous run of positions; row tile i only
        # needs the narrow column band covering the cycles it touches.
        ends = np.r_[starts[1:], P]
        grp = np.repeat(np.arange(starts.size), ends - starts)
        n_band = 1
        for t in range(n_tiles):
            r0 = t * tile_p
            if r0 >= P:
                continue
            r1 = min((t + 1) * tile_p, P) - 1
            c_lo = int(starts[grp[r0]])
            c_hi = int(ends[grp[r1]]) - 1
            band_start[t] = c_lo // band_bw
            width = c_hi + 1 - band_start[t] * band_bw
            n_band = max(n_band, -(-width // band_bw))
    else:
        # TODO(synk): non-contiguous cycle layout -> dense (full-width) band fallback.
        n_band = p_pad // band_bw

    # Keep every band window inside the padded array.
    p_pad = _round_up(max(p_pad, (int(band_start.max()) + n_band) * band_bw), tile_p)
    n_tiles = p_pad // tile_p
    if band_start.shape[0] < n_tiles:
        band_start = np.concatenate(
            [band_start, np.zeros((n_tiles - band_start.shape[0],), np.int32)])

    # -1 sentinel so padded rows/columns never alias cycle 0.
    cid_pad = np.full((p_pad,), -1, np.int32)
    cid_pad[:P] = cid_np
    cid_rows = jnp.asarray(cid_pad.reshape(p_pad, 1))
    cid_cols = jnp.asarray(cid_pad.reshape(1, p_pad))

    local_f32 = jnp.pad(local, ((0, p_pad - P), (0, c_pad - C)))
    local_bf16 = local_f32.astype(jnp.bfloat16)
    eps = jnp.asarray(epsilon, jnp.float32).reshape(1, 1)
    band_start_j = jnp.asarray(band_start)

    # ---- VMEM budget from the actual (padded) buffer sizes -------------------
    def _tile_bytes(r, c, itemsize):
        return _round_up(r, 8) * _round_up(c, 128) * itemsize
    needed = (2 * _tile_bytes(tile_p, 1, 4)          # cid rows (double-buffered)
              + 2 * _tile_bytes(1, band_bw, 4)       # cid band
              + 2 * _tile_bytes(tile_p, c_pad, 4)    # local rows f32
              + 2 * _tile_bytes(band_bw, c_pad, 2)   # x band bf16
              + 2 * _tile_bytes(tile_p, c_pad, 4)    # output tile
              + 1 * _tile_bytes(tile_p, c_pad, 4))   # accumulator scratch
    vmem_limit = int(min(64 * 1024 * 1024, max(32 * 1024 * 1024, 2 * needed)))

    out = pl.pallas_call(
        _cycle_embedding_kernel,
        out_shape=jax.ShapeDtypeStruct((p_pad, c_pad), jnp.float32),
        grid_spec=pltpu.PrefetchScalarGridSpec(
            num_scalar_prefetch=1,                   # band_start -> SMEM, used by index_maps
            grid=(n_tiles, n_band),                  # rows parallel, band axis = reduction
            in_specs=[
                pl.BlockSpec(memory_space=pltpu.SMEM),                            # epsilon
                pl.BlockSpec((tile_p, 1), lambda i, k, bs: (i, 0)),               # row-tile cycle ids
                pl.BlockSpec((1, band_bw), lambda i, k, bs: (0, bs[i] + k)),      # band cycle ids
                pl.BlockSpec((tile_p, c_pad), lambda i, k, bs: (i, 0)),           # local rows (f32)
                pl.BlockSpec((band_bw, c_pad), lambda i, k, bs: (bs[i] + k, 0)),  # x band (bf16)
            ],
            out_specs=pl.BlockSpec((tile_p, c_pad), lambda i, k, bs: (i, 0)),
            scratch_shapes=[pltpu.VMEM((tile_p, c_pad), jnp.float32)],
        ),
        compiler_params=pltpu.CompilerParams(
            dimension_semantics=("parallel", "arbitrary"),
            vmem_limit_bytes=vmem_limit,
        ),
    )(band_start_j, eps, cid_rows, cid_cols, local_f32, local_bf16)

    return out[:P, :C]


def _reference(x, pos2node, cycle_id, num_cycles, emb_table, epsilon):
    emb = emb_table[x]                            # [N, C]
    local = emb[pos2node]                         # [P, C]
    cyc = jnp.zeros((num_cycles, emb_table.shape[1]), jnp.float32)
    cyc = cyc.at[cycle_id].add(local)             # per-cycle sum
    bcast = cyc[cycle_id]                         # broadcast back to positions
    return (1.0 + epsilon) * local + bcast


if __name__ == "__main__":
    key = jax.random.PRNGKey(0)
    V, C, N = 8, 32, 12          # vocab (node label types), hidden_dim, num nodes
    k1, k2 = jax.random.split(key)

    # Deterministic parameter init (module __init__: epsilon = 0.0; node_emb = Embedding(V, C))
    emb_table = jax.random.normal(k1, (V, C), dtype=jnp.float32)
    epsilon = 0.0

    # Inputs: node labels + node2cycle transfer map (3 cycles over 12 nodes)
    x = jax.random.randint(k2, (N,), 0, V, dtype=jnp.int32)
    cycles = [[0, 1, 2, 3, 4], [3, 4, 5, 6], [7, 8, 9, 10, 11]]
    pos2node = jnp.asarray([n for cyc in cycles for n in cyc], jnp.int32)          # [P]
    cycle_id = jnp.asarray([i for i, cyc in enumerate(cycles) for _ in cyc],
                           jnp.int32)                                              # [P]
    num_cycles = len(cycles)

    out = cycle_embedding(x, pos2node, cycle_id, num_cycles, emb_table, epsilon)
    out = jax.block_until_ready(out)

    ref = _reference(x, pos2node, cycle_id, num_cycles, emb_table, epsilon)
    assert out.shape == ref.shape == (pos2node.shape[0], C)
    # bf16 MXU operands for the cycle-sum path -> tolerance reflects bf16 rounding
    # of ~5-term sums of O(1) values; local/(1+eps) branch is exact f32.
    assert jnp.allclose(out, ref, atol=5e-2, rtol=5e-2), "mismatch vs reference"

    print("KERNEL_OK")
</pallas_src>

<mosaic_0001>
module attributes {stable_mosaic.version = 11 : i64} {
  func.func @_cycle_embedding_kernel(%arg0: i32, %arg1: i32, %arg2: memref<1xi32, #tpu.memory_space<smem>>, %arg3: memref<1x1xf32, #tpu.memory_space<smem>>, %arg4: memref<128x1xi32, #tpu.memory_space<vmem>>, %arg5: memref<1x128xi32, #tpu.memory_space<vmem>>, %arg6: memref<128x128xf32, #tpu.memory_space<vmem>>, %arg7: memref<128x128xbf16, #tpu.memory_space<vmem>>, %arg8: memref<128x128xf32, #tpu.memory_space<vmem>>, %arg9: memref<128x128xf32, #tpu.memory_space<vmem>>) attributes {dimension_semantics = [#tpu.dimension_semantics<parallel>, #tpu.dimension_semantics<arbitrary>], iteration_bounds = array<i64: 1, 1>, scalar_prefetch = 1 : i64, scratch_operands = 1 : i64, tpu.core_type = #tpu.core_type<tc>, window_params = [{transform_indices = @transform_0, window_bounds = array<i64: 1, 1>}, {transform_indices = @transform_1, window_bounds = array<i64: 128, 1>}, {transform_indices = @transform_2, window_bounds = array<i64: 1, 128>}, {transform_indices = @transform_3, window_bounds = array<i64: 128, 128>}, {transform_indices = @transform_4, window_bounds = array<i64: 128, 128>}, {transform_indices = @transform_5, window_bounds = array<i64: 128, 128>}]} {
    %c0_i32 = arith.constant 0 : i32
    %0 = arith.cmpi eq, %arg1, %c0_i32 : i32
    %1 = arith.extui %0 : i1 to i32
    %c0_i32_0 = arith.constant 0 : i32
    %2 = arith.cmpi ne, %1, %c0_i32_0 : i32
    scf.if %2 {
      %cst_14 = arith.constant 0.000000e+00 : f32
      %20 = vector.broadcast %cst_14 : f32 to vector<128x128xf32>
      %c0_15 = arith.constant 0 : index
      %c0_16 = arith.constant 0 : index
      %21 = vector.load %arg9[%c0_15, %c0_16] : memref<128x128xf32, #tpu.memory_space<vmem>>, vector<128x128xf32>
      tpu.vector_store %arg9[%c0_15, %c0_16], %20 {strides = array<i32>} : memref<128x128xf32, #tpu.memory_space<vmem>>, vector<128x128xf32>,
    } else {
    }
    %c0 = arith.constant 0 : index
    %c0_1 = arith.constant 0 : index
    %3 = vector.load %arg4[%c0, %c0_1] : memref<128x1xi32, #tpu.memory_space<vmem>>, vector<128x1xi32>
    %c0_2 = arith.constant 0 : index
    %c0_3 = arith.constant 0 : index
    %4 = vector.load %arg5[%c0_2, %c0_3] : memref<1x128xi32, #tpu.memory_space<vmem>>, vector<1x128xi32>
    %5 = vector.broadcast %3 : vector<128x1xi32> to vector<128x128xi32>
    %6 = vector.broadcast %4 : vector<1x128xi32> to vector<128x128xi32>
    %7 = arith.cmpi eq, %5, %6 : vector<128x128xi32>
    %cst = arith.constant 1.000000e+00 : f32
    %cst_4 = arith.constant 0.000000e+00 : f32
    %8 = vector.broadcast %cst : f32 to vector<128x128xf32>
    %9 = vector.broadcast %cst_4 : f32 to vector<128x128xf32>
    %10 = arith.select %7, %8, %9 : vector<128x128xi1>, vector<128x128xf32>
    %11 = arith.truncf %10 : vector<128x128xf32> to vector<128x128xbf16>
    %c0_5 = arith.constant 0 : index
    %c0_6 = arith.constant 0 : index
    %12 = vector.load %arg9[%c0_5, %c0_6] : memref<128x128xf32, #tpu.memory_space<vmem>>, vector<128x128xf32>
    %c0_7 = arith.constant 0 : index
    %c0_8 = arith.constant 0 : index
    %13 = vector.load %arg7[%c0_7, %c0_8] : memref<128x128xbf16, #tpu.memory_space<vmem>>, vector<128x128xbf16>
    %cst_9 = arith.constant dense<0.000000e+00> : vector<128x128xf32>
    %14 = tpu.matmul %11, %13, %cst_9 {dimension_numbers = #tpu.dot_dimension_numbers<[1], [0], [0], [1], [0, 0, 1, 1], [], []>} : vector<128x128xbf16>, vector<128x128xbf16>, vector<128x128xf32> -> vector<128x128xf32>
    %15 = arith.addf %12, %14 : vector<128x128xf32>
    %c0_10 = arith.constant 0 : index
    %c0_11 = arith.constant 0 : index
    %16 = vector.load %arg9[%c0_10, %c0_11] : memref<128x128xf32, #tpu.memory_space<vmem>>, vector<128x128xf32>
    tpu.vector_store %arg9[%c0_10, %c0_11], %15 {strides = array<i32>} : memref<128x128xf32, #tpu.memory_space<vmem>>, vector<128x128xf32>,
    %c0_i32_12 = arith.constant 0 : i32
    %17 = arith.cmpi eq, %arg1, %c0_i32_12 : i32
    %18 = arith.extui %17 : i1 to i32
    %c0_i32_13 = arith.constant 0 : i32
    %19 = arith.cmpi ne, %18, %c0_i32_13 : i32
    scf.if %19 {
      %c0_14 = arith.constant 0 : index
      %c0_15 = arith.constant 0 : index
      %20 = memref.load %arg3[%c0_14, %c0_15] : memref<1x1xf32, #tpu.memory_space<smem>>
      %cst_16 = arith.constant 1.000000e+00 : f32
      %21 = arith.addf %cst_16, %20 : f32
      %c0_17 = arith.constant 0 : index
      %c0_18 = arith.constant 0 : index
      %22 = vector.load %arg6[%c0_17, %c0_18] : memref<128x128xf32, #tpu.memory_space<vmem>>, vector<128x128xf32>
      %23 = vector.broadcast %21 : f32 to vector<128x128xf32>
      %24 = arith.mulf %23, %22 : vector<128x128xf32>
      %c0_19 = arith.constant 0 : index
      %c0_20 = arith.constant 0 : index
      %25 = vector.load %arg9[%c0_19, %c0_20] : memref<128x128xf32, #tpu.memory_space<vmem>>, vector<128x128xf32>
      %26 = arith.addf %24, %25 : vector<128x128xf32>
      %c0_21 = arith.constant 0 : index
      %c0_22 = arith.constant 0 : index
      %27 = vector.load %arg8[%c0_21, %c0_22] : memref<128x128xf32, #tpu.memory_space<vmem>>, vector<128x128xf32>
      tpu.vector_store %arg8[%c0_21, %c0_22], %26 {strides = array<i32>} : memref<128x128xf32, #tpu.memory_space<vmem>>, vector<128x128xf32>,
    } else {
    }
    return
  }
  func.func @transform_0(%arg0: i32, %arg1: i32, %arg2: memref<1xi32, #tpu.memory_space<smem>>) -> (i32, i32) {
    %c0_i32 = arith.constant 0 : i32
    %c0_i32_0 = arith.constant 0 : i32
    %c0_i32_1 = arith.constant 0 : i32
    return %c0_i32, %c0_i32_0 : i32, i32
  }
  func.func @transform_1(%arg0: i32, %arg1: i32, %arg2: memref<1xi32, #tpu.memory_space<smem>>) -> (i32, i32) {
    %c0_i32 = arith.constant 0 : i32
    %c0_i32_0 = arith.constant 0 : i32
    return %arg0, %c0_i32 : i32, i32
  }
  func.func @transform_2(%arg0: i32, %arg1: i32, %arg2: memref<1xi32, #tpu.memory_space<smem>>) -> (i32, i32) {
    %0 = arith.index_cast %arg0 : i32 to index
    %1 = memref.load %arg2[%0] : memref<1xi32, #tpu.memory_space<smem>>
    %2 = arith.addi %1, %arg1 : i32
    %c0_i32 = arith.constant 0 : i32
    %c0_i32_0 = arith.constant 0 : i32
    return %c0_i32, %2 : i32, i32
  }
  func.func @transform_3(%arg0: i32, %arg1: i32, %arg2: memref<1xi32, #tpu.memory_space<smem>>) -> (i32, i32) {
    %c0_i32 = arith.constant 0 : i32
    %c0_i32_0 = arith.constant 0 : i32
    return %arg0, %c0_i32 : i32, i32
  }
  func.func @transform_4(%arg0: i32, %arg1: i32, %arg2: memref<1xi32, #tpu.memory_space<smem>>) -> (i32, i32) {
    %0 = arith.index_cast %arg0 : i32 to index
    %1 = memref.load %arg2[%0] : memref<1xi32, #tpu.memory_space<smem>>
    %2 = arith.addi %1, %arg1 : i32
    %c0_i32 = arith.constant 0 : i32
    %c0_i32_0 = arith.constant 0 : i32
    return %2, %c0_i32 : i32, i32
  }
  func.func @transform_5(%arg0: i32, %arg1: i32, %arg2: memref<1xi32, #tpu.memory_space<smem>>) -> (i32, i32) {
    %c0_i32 = arith.constant 0 : i32
    %c0_i32_0 = arith.constant 0 : i32
    return %arg0, %c0_i32 : i32, i32
  }
}

</mosaic_0001>

<llo_original>
// kernel: tpu_custom_call.1
$region0: #{tpu_custom_call.1}
  #allocation0 [shape = 'u32[]', space=smem, size = 0x4, offset = 0x4, fixed_abs, tag = 'smem constant byte address 0x4 - core index']
  #allocation1 [shape = 'u32[144,128]{1,0:T(1,128)}', space=vmem, size = 0x12000, scoped, tag = 'internal scratch']
  #allocation2 [shape = 'f32[128,128]{1,0:T(8,128)}', space=vmem, size = 0x10000, scoped, tag = 'scratch operand']
  #allocation3 [shape = 's32[1]{0}', space=sflag, size = 0x4, scoped, tag = 'scoped memory for tpu_custom_call.1']
  #allocation4 [shape = 's32[1]{0:T(128)S(6)}', space=smem, size = 0x200, scoped, tag = 'prefetched SMEM operand 0']
  #allocation5 [shape = 'f32[1,1]{1,0:T(1,128)S(6)}', space=smem, size = 0x200, scoped, tag = 'scoped memory for tpu_custom_call.1']
  %s0 = inlined_call_operand.<no memory space> [shape: s32[1], index: 0, kind: input, shape index: {}]
  %s1 = inlined_call_operand.<no memory space> [shape: f32[1,1], index: 1, kind: input, shape index: {}]
  %s2 = inlined_call_operand.vmem [shape: s32[128,1], index: 2, kind: input, shape index: {}]
  %s3 = inlined_call_operand.vmem [shape: s32[1,128], index: 3, kind: input, shape index: {}]
  %s4 = inlined_call_operand.vmem [shape: f32[128,128], index: 4, kind: input, shape index: {}]
  %s5 = inlined_call_operand.hbm [shape: bf16[128,128], index: 5, kind: input, shape index: {}]
  %s6 = inlined_call_operand.hbm [shape: f32[128,128], index: 6, kind: output, shape index: {}]
  %s7 = sld [smem:[#allocation0]]
  $region42: #{tpu_custom_call.1} parent=0
    _
  %s9 = ssub.s32 1, %s7
  %s10 = scalar_select 0, %s9, %s7
  %11 = sst [smem:[#allocation4]] %s0
  %12 = sst [smem:[#allocation5]] %s1
  $region1: #{tpu_custom_call.1} parent=0
    #allocation6 [shape = 'u8[32768]{0}', space=vmem, size = 0x8000, scoped, tag = 'input window, operand 5, single buffered']
    #allocation7 [shape = 's32[1]{0}', space=sflag, size = 0x4, scoped, tag = 'scoped memory for tpu_custom_call.1']
    #allocation8 [shape = 's32[1]{0}', space=sflag, size = 0x4, scoped, tag = 'scoped memory for tpu_custom_call.1']
    #allocation9 [shape = 'u8[65536]{0}', space=vmem, size = 0x10000, scoped, tag = 'output window, operand 0, single buffered']
    %13 = vsyncpa [#allocation7], 0
    %14 = vsyncpa [#allocation8], 0
    // Predicated region
    $region2: #{tpu_custom_call.1} parent=1 // pred_check
      _
    $region3: #{tpu_custom_call.1} parent=1 // pred_check_branch
      %16 = sbr.rel (0) target = $region5
    $region4: #{tpu_custom_call.1} parent=1 // pred_region
      _
    $region5: #{tpu_custom_call.1} parent=1 // pred_fallthru
      _
    // Predicated region
    $region6: #{tpu_custom_call.1} parent=1 // pred_check
      _
    $region7: #{tpu_custom_call.1} parent=1 // pred_check_branch
      %18 = sbr.rel (0) target = $region9
    $region8: #{tpu_custom_call.1} parent=1 // pred_region
      _
    $region9: #{tpu_custom_call.1} parent=1 // pred_fallthru
      _
    // Predicated region
    $region10: #{tpu_custom_call.1} parent=1 // pred_check
      _
    $region11: #{tpu_custom_call.1} parent=1 // pred_check_branch
      %20 = sbr.rel (0) target = $region13
    $region12: #{tpu_custom_call.1} parent=1 // pred_region
      %s21 = sld [smem:[#allocation4]]
      %s22 = sadd.s32 %s21, 0
      %p23 = scmp.lt.s32.totalorder %s22, 0
      %s24 = scalar_select %p23, %s22, 0
      %s25 = scalar_lea.vmem %s3, %s24
      %s26 = sld [smem:[#allocation4]]
      %s27 = sadd.s32 %s26, 0
    $region13: #{tpu_custom_call.1} parent=1 // pred_fallthru
      _
    // Predicated region
    $region14: #{tpu_custom_call.1} parent=1 // pred_check
      _
    $region15: #{tpu_custom_call.1} parent=1 // pred_check_branch
      %29 = sbr.rel (0) target = $region17
    $region16: #{tpu_custom_call.1} parent=1 // pred_region
      _
    $region17: #{tpu_custom_call.1} parent=1 // pred_fallthru
      _
    // Predicated region
    $region18: #{tpu_custom_call.1} parent=1 // pred_check
      _
    $region19: #{tpu_custom_call.1} parent=1 // pred_check_branch
      %31 = sbr.rel (0) target = $region21
    $region20: #{tpu_custom_call.1} parent=1 // pred_region
      %s32 = sld [smem:[#allocation4]]
      %s33 = sadd.s32 %s32, 0
      %s34 = smul.u32 16, %s33
      %s36 = ssub.s32 1024, 1024
      %37 = vsyncadd [#allocation7], %s36
      %s38 = smul.addr %s34, 64
      %s39 = scalar_lea.hbm %s5, %s38
      %s40 = sshll.u32 [#allocation6], 4
      %s41 = int_to_ptr.vmem [resolvable:$true] %s40
      %46 = dma.hbm_to_vmem [thread:$0]  %s39, 1024, %s41, [#allocation7], 64, 64, 4
    $region21: #{tpu_custom_call.1} parent=1 // pred_fallthru
      _
    // Predicated region
    $region22: #{tpu_custom_call.1} parent=1 // pred_check
      _
    $region23: #{tpu_custom_call.1} parent=1 // pred_check_branch
      %48 = sbr.rel (0) target = $region25
    $region24: #{tpu_custom_call.1} parent=1 // pred_region
      %49 = dma.done [#allocation7], 1024
    $region25: #{tpu_custom_call.1} parent=1 // pred_fallthru
      _
    %s50 = sld [smem:[#allocation4]]
    %s51 = sadd.s32 %s50, 0
    %p52 = scmp.lt.s32.totalorder %s51, 0
    %s53 = scalar_select %p52, %s51, 0
    %s54 = scalar_lea.vmem %s3, %s53
    %s55 = sld [smem:[#allocation4]]
    %s56 = sadd.s32 %s55, 0
    %p57 = scmp.lt.s32.totalorder %s56, 0
    %s58 = scalar_select %p57, %s56, 0
    %s59 = scalar_lea.vmem %s3, %s58
    %s60 = sld [smem:[#allocation4]]
    %s61 = sadd.s32 %s60, 0
    %s62 = sld [smem:[#allocation4]]
    %s63 = sadd.s32 %s62, 0
    %s64 = smul.u32 16, %s63
    %p66 = scmp.eq.s32.totalorder 0, 0
    // Predicated region
    $region26: #{tpu_custom_call.1} parent=1 // pred_check
      %p67 = pneg %p66
    $region27: #{tpu_custom_call.1} parent=1 // pred_check_branch
      %69 = sbr.rel (%p67) target = $region29
    $region28: #{tpu_custom_call.1} parent=1 // pred_region
      %70 = vst [vmem:[#allocation2] sm:$0xff] 0.0
      %71 = vst [vmem:[#allocation2 + $0x8] sm:$0xff] 0.0
      %72 = vst [vmem:[#allocation2 + $0x10] sm:$0xff] 0.0
      %73 = vst [vmem:[#allocation2 + $0x18] sm:$0xff] 0.0
      %74 = vst [vmem:[#allocation2 + $0x20] sm:$0xff] 0.0
      %75 = vst [vmem:[#allocation2 + $0x28] sm:$0xff] 0.0
      %76 = vst [vmem:[#allocation2 + $0x30] sm:$0xff] 0.0
      %77 = vst [vmem:[#allocation2 + $0x38] sm:$0xff] 0.0
      %78 = vst [vmem:[#allocation2 + $0x40] sm:$0xff] 0.0
      %79 = vst [vmem:[#allocation2 + $0x48] sm:$0xff] 0.0
      %80 = vst [vmem:[#allocation2 + $0x50] sm:$0xff] 0.0
      %81 = vst [vmem:[#allocation2 + $0x58] sm:$0xff] 0.0
      %82 = vst [vmem:[#allocation2 + $0x60] sm:$0xff] 0.0
      %83 = vst [vmem:[#allocation2 + $0x68] sm:$0xff] 0.0
      %84 = vst [vmem:[#allocation2 + $0x70] sm:$0xff] 0.0
      %85 = vst [vmem:[#allocation2 + $0x78] sm:$0xff] 0.0
    $region29: #{tpu_custom_call.1} parent=1 // pred_fallthru
      _
    %v86 = vld [vmem:[%s2] sm:$0xff]
    %v87 = vld [vmem:[%s2 + $0x8] sm:$0xff]
    %v88 = vld [vmem:[%s2 + $0x10] sm:$0xff]
    %v89 = vld [vmem:[%s2 + $0x18] sm:$0xff]
    %v90 = vld [vmem:[%s2 + $0x20] sm:$0xff]
    %v91 = vld [vmem:[%s2 + $0x28] sm:$0xff]
    %v92 = vld [vmem:[%s2 + $0x30] sm:$0xff]
    %v93 = vld [vmem:[%s2 + $0x38] sm:$0xff]
    %v94 = vld [vmem:[%s2 + $0x40] sm:$0xff]
    %v95 = vld [vmem:[%s2 + $0x48] sm:$0xff]
    %v96 = vld [vmem:[%s2 + $0x50] sm:$0xff]
    %v97 = vld [vmem:[%s2 + $0x58] sm:$0xff]
    %v98 = vld [vmem:[%s2 + $0x60] sm:$0xff]
    %v99 = vld [vmem:[%s2 + $0x68] sm:$0xff]
    %v100 = vld [vmem:[%s2 + $0x70] sm:$0xff]
    %v101 = vld [vmem:[%s2 + $0x78] sm:$0xff]
    %v102 = vld [vmem:[%s59] sm:$0x1]
    %103 = vset.pattern.permute.xlu0 0
    %104 = vperm.xlu0 %103, %v86
    %v105 = vpop.permute.xlu0 %104
    %106 = vset.pattern.permute.xlu0 0
    %107 = vperm.xlu0 %106, %v87
    %v108 = vpop.permute.xlu0 %107
    %109 = vset.pattern.permute.xlu0 0
    %110 = vperm.xlu0 %109, %v88
    %v111 = vpop.permute.xlu0 %110
    %112 = vset.pattern.permute.xlu0 0
    %113 = vperm.xlu0 %112, %v89
    %v114 = vpop.permute.xlu0 %113
    %115 = vset.pattern.permute.xlu0 0
    %116 = vperm.xlu0 %115, %v90
    %v117 = vpop.permute.xlu0 %116
    %118 = vset.pattern.permute.xlu0 0
    %119 = vperm.xlu0 %118, %v91
    %v120 = vpop.permute.xlu0 %119
    %121 = vset.pattern.permute.xlu0 0
    %122 = vperm.xlu0 %121, %v92
    %v123 = vpop.permute.xlu0 %122
    %124 = vset.pattern.permute.xlu0 0
    %125 = vperm.xlu0 %124, %v93
    %v126 = vpop.permute.xlu0 %125
    %127 = vset.pattern.permute.xlu0 0
    %128 = vperm.xlu0 %127, %v94
    %v129 = vpop.permute.xlu0 %128
    %130 = vset.pattern.permute.xlu0 0
    %131 = vperm.xlu0 %130, %v95
    %v132 = vpop.permute.xlu0 %131
    %133 = vset.pattern.permute.xlu0 0
    %134 = vperm.xlu0 %133, %v96
    %v135 = vpop.permute.xlu0 %134
    %136 = vset.pattern.permute.xlu0 0
    %137 = vperm.xlu0 %136, %v97
    %v138 = vpop.permute.xlu0 %137
    %139 = vset.pattern.permute.xlu0 0
    %140 = vperm.xlu0 %139, %v98
    %v141 = vpop.permute.xlu0 %140
    %142 = vset.pattern.permute.xlu0 0
    %143 = vperm.xlu0 %142, %v99
    %v144 = vpop.permute.xlu0 %143
    %145 = vset.pattern.permute.xlu0 0
    %146 = vperm.xlu0 %145, %v100
    %v147 = vpop.permute.xlu0 %146
    %148 = vset.pattern.permute.xlu0 0
    %149 = vperm.xlu0 %148, %v101
    %v150 = vpop.permute.xlu0 %149
    %v151 = vlaneseq
    %v152 = vshrl.u32 %v151, 7
    %v153 = vsub.s32 0, %v152
    %v154 = vrot.slane %v102, %v153
    %vm155 = vcmp.eq.s32.totalorder %v105, %v154
    %vm156 = vcmp.eq.s32.totalorder %v108, %v154
    %vm157 = vcmp.eq.s32.totalorder %v111, %v154
    %vm158 = vcmp.eq.s32.totalorder %v114, %v154
    %vm159 = vcmp.eq.s32.totalorder %v117, %v154
    %vm160 = vcmp.eq.s32.totalorder %v120, %v154
    %vm161 = vcmp.eq.s32.totalorder %v123, %v154
    %vm162 = vcmp.eq.s32.totalorder %v126, %v154
    %vm163 = vcmp.eq.s32.totalorder %v129, %v154
    %vm164 = vcmp.eq.s32.totalorder %v132, %v154
    %vm165 = vcmp.eq.s32.totalorder %v135, %v154
    %vm166 = vcmp.eq.s32.totalorder %v138, %v154
    %vm167 = vcmp.eq.s32.totalorder %v141, %v154
    %vm168 = vcmp.eq.s32.totalorder %v144, %v154
    %vm169 = vcmp.eq.s32.totalorder %v147, %v154
    %vm170 = vcmp.eq.s32.totalorder %v150, %v154
    %v171 = vsel %vm155, 1.0, 0.0
    %v172 = vsel %vm156, 1.0, 0.0
    %v173 = vsel %vm157, 1.0, 0.0
    %v174 = vsel %vm158, 1.0, 0.0
    %v175 = vsel %vm159, 1.0, 0.0
    %v176 = vsel %vm160, 1.0, 0.0
    %v177 = vsel %vm161, 1.0, 0.0
    %v178 = vsel %vm162, 1.0, 0.0
    %v179 = vsel %vm163, 1.0, 0.0
    %v180 = vsel %vm164, 1.0, 0.0
    %v181 = vsel %vm165, 1.0, 0.0
    %v182 = vsel %vm166, 1.0, 0.0
    %v183 = vsel %vm167, 1.0, 0.0
    %v184 = vsel %vm168, 1.0, 0.0
    %v185 = vsel %vm169, 1.0, 0.0
    %v186 = vsel %vm170, 1.0, 0.0
    %v187 = vpack.c.bf16 %v172, %v171
    %v188 = vpack.c.bf16 %v174, %v173
    %v189 = vpack.c.bf16 %v176, %v175
    %v190 = vpack.c.bf16 %v178, %v177
    %v191 = vpack.c.bf16 %v180, %v179
    %v192 = vpack.c.bf16 %v182, %v181
    %v193 = vpack.c.bf16 %v184, %v183
    %v194 = vpack.c.bf16 %v186, %v185
    %v195 = vld [vmem:[#allocation2] sm:$0xff]
    %v196 = vld [vmem:[#allocation2 + $0x8] sm:$0xff]
    %v197 = vld [vmem:[#allocation2 + $0x10] sm:$0xff]
    %v198 = vld [vmem:[#allocation2 + $0x18] sm:$0xff]
    %v199 = vld [vmem:[#allocation2 + $0x20] sm:$0xff]
    %v200 = vld [vmem:[#allocation2 + $0x28] sm:$0xff]
    %v201 = vld [vmem:[#allocation2 + $0x30] sm:$0xff]
    %v202 = vld [vmem:[#allocation2 + $0x38] sm:$0xff]
    %v203 = vld [vmem:[#allocation2 + $0x40] sm:$0xff]
    %v204 = vld [vmem:[#allocation2 + $0x48] sm:$0xff]
    %v205 = vld [vmem:[#allocation2 + $0x50] sm:$0xff]
    %v206 = vld [vmem:[#allocation2 + $0x58] sm:$0xff]
    %v207 = vld [vmem:[#allocation2 + $0x60] sm:$0xff]
    %v208 = vld [vmem:[#allocation2 + $0x68] sm:$0xff]
    %v209 = vld [vmem:[#allocation2 + $0x70] sm:$0xff]
    %v210 = vld [vmem:[#allocation2 + $0x78] sm:$0xff]
    %v211 = vld [vmem:[#allocation6] sm:$0xf]
    %v212 = vld [vmem:[#allocation6 + $0x4] sm:$0xf]
    %v213 = vld [vmem:[#allocation6 + $0x8] sm:$0xf]
    %v214 = vld [vmem:[#allocation6 + $0xc] sm:$0xf]
    %v215 = vld [vmem:[#allocation6 + $0x10] sm:$0xf]
    %v216 = vld [vmem:[#allocation6 + $0x14] sm:$0xf]
    %v217 = vld [vmem:[#allocation6 + $0x18] sm:$0xf]
    %v218 = vld [vmem:[#allocation6 + $0x1c] sm:$0xf]
    %v219 = vld [vmem:[#allocation6 + $0x20] sm:$0xf]
    %v220 = vld [vmem:[#allocation6 + $0x24] sm:$0xf]
    %v221 = vld [vmem:[#allocation6 + $0x28] sm:$0xf]
    %v222 = vld [vmem:[#allocation6 + $0x2c] sm:$0xf]
    %v223 = vld [vmem:[#allocation6 + $0x30] sm:$0xf]
    %v224 = vld [vmem:[#allocation6 + $0x34] sm:$0xf]
    %v225 = vld [vmem:[#allocation6 + $0x38] sm:$0xf]
    %v226 = vld [vmem:[#allocation6 + $0x3c] sm:$0xf]
    %v243 = vunpack.c.l.b16 %v211
    %v244 = vunpack.c.l.b16 %v212
    %v245 = vunpack.c.l.b16 %v213
    %v246 = vunpack.c.l.b16 %v214
    %v247 = vunpack.c.l.b16 %v215
    %v248 = vunpack.c.l.b16 %v216
    %v249 = vunpack.c.l.b16 %v217
    %v250 = vunpack.c.l.b16 %v218
    %v251 = vunpack.c.l.b16 %v219
    %v252 = vunpack.c.l.b16 %v220
    %v253 = vunpack.c.l.b16 %v221
    %v254 = vunpack.c.l.b16 %v222
    %v255 = vunpack.c.l.b16 %v223
    %v256 = vunpack.c.l.b16 %v224
    %v257 = vunpack.c.l.b16 %v225
    %v258 = vunpack.c.l.b16 %v226
    %v259 = vpack.c.b16 %v244, %v243
    %v260 = vpack.c.b16 %v246, %v245
    %v261 = vpack.c.b16 %v248, %v247
    %v262 = vpack.c.b16 %v250, %v249
    %v263 = vpack.c.b16 %v252, %v251
    %v264 = vpack.c.b16 %v254, %v253
    %v265 = vpack.c.b16 %v256, %v255
    %v266 = vpack.c.b16 %v258, %v257
    %275 = vmatprep.subr.bf16.mxu0 0
    %276 = vmatpush1.bf16.msra.mxu0 %v259
    %277 = vmatprep.subr.bf16.mxu0 0
    %278 = vmatpush1.bf16.msra.mxu0 %v260
    %279 = vmatprep.subr.bf16.mxu0 0
    %280 = vmatpush1.bf16.msra.mxu0 %v261
    %281 = vmatprep.subr.bf16.mxu0 0
    %282 = vmatpush1.bf16.msra.mxu0 %v262
    %283 = vmatprep.subr.bf16.mxu0 0
    %284 = vmatpush1.bf16.msra.mxu0 %v263
    %285 = vmatprep.subr.bf16.mxu0 0
    %286 = vmatpush1.bf16.msra.mxu0 %v264
    %287 = vmatprep.subr.bf16.mxu0 0
    %288 = vmatpush1.bf16.msra.mxu0 %v265
    %289 = vmatprep.subr.bf16.mxu0 0
    %290 = vmatpush1.bf16.msra.mxu0 %v266
    %291 = vmatprep.subr.bf16.mxu0 0
    %292 = vmatpush1.bf16.msra.mxu0 0
    %293 = vmatprep.subr.bf16.mxu0 0
    %294 = vmatpush1.bf16.msra.mxu0 0
    %295 = vmatprep.subr.bf16.mxu0 0
    %296 = vmatpush1.bf16.msra.mxu0 0
    %297 = vmatprep.subr.bf16.mxu0 0
    %298 = vmatpush1.bf16.msra.mxu0 0
    %299 = vmatprep.subr.bf16.mxu0 0
    %300 = vmatpush1.bf16.msra.mxu0 0
    %301 = vmatprep.subr.bf16.mxu0 0
    %302 = vmatpush1.bf16.msra.mxu0 0
    %303 = vmatprep.subr.bf16.mxu0 0
    %304 = vmatpush1.bf16.msra.mxu0 0
    %305 = vmatprep.subr.bf16.mxu0 0
    %306 = vmatpush1.bf16.msra.mxu0 0
    %307 = vmatprep.mubr.bf16.mxu0 0
    %308 = vmatmul.mubr.bf16.gmra.mrb[0].mxu0 %v187
    %v309 = vpop.f32.mrb[0].mxu0
    %v310 = vadd.f32 0.0, %v309
    %v311 = vpop.f32.mrb[0].mxu0
    %v312 = vpop.f32.mrb[0].mxu0
    %v313 = vadd.f32 0.0, %v312
    %v314 = vpop.f32.mrb[0].mxu0
    %315 = vmatprep.mubr.bf16.mxu0 0
    %316 = vmatmul.mubr.bf16.gmra.mrb[0].mxu0 %v188
    %v317 = vpop.f32.mrb[0].mxu0
    %v318 = vadd.f32 0.0, %v317
    %v319 = vpop.f32.mrb[0].mxu0
    %v320 = vpop.f32.mrb[0].mxu0
    %v321 = vadd.f32 0.0, %v320
    %v322 = vpop.f32.mrb[0].mxu0
    %323 = vmatprep.mubr.bf16.mxu0 0
    %324 = vmatmul.mubr.bf16.gmra.mrb[0].mxu0 %v189
    %v325 = vpop.f32.mrb[0].mxu0
    %v326 = vadd.f32 0.0, %v325
    %v327 = vpop.f32.mrb[0].mxu0
    %v328 = vpop.f32.mrb[0].mxu0
    %v329 = vadd.f32 0.0, %v328
    %v330 = vpop.f32.mrb[0].mxu0
    %331 = vmatprep.mubr.bf16.mxu0 0
    %332 = vmatmul.mubr.bf16.gmra.mrb[0].mxu0 %v190
    %v333 = vpop.f32.mrb[0].mxu0
    %v334 = vadd.f32 0.0, %v333
    %v335 = vpop.f32.mrb[0].mxu0
    %v336 = vpop.f32.mrb[0].mxu0
    %v337 = vadd.f32 0.0, %v336
    %v338 = vpop.f32.mrb[0].mxu0
    %339 = vmatprep.mubr.bf16.mxu0 0
    %340 = vmatmul.mubr.bf16.gmra.mrb[0].mxu0 %v191
    %v341 = vpop.f32.mrb[0].mxu0
    %v342 = vadd.f32 0.0, %v341
    %v343 = vpop.f32.mrb[0].mxu0
    %v344 = vpop.f32.mrb[0].mxu0
    %v345 = vadd.f32 0.0, %v344
    %v346 = vpop.f32.mrb[0].mxu0
    %347 = vmatprep.mubr.bf16.mxu0 0
    %348 = vmatmul.mubr.bf16.gmra.mrb[0].mxu0 %v192
    %v349 = vpop.f32.mrb[0].mxu0
    %v350 = vadd.f32 0.0, %v349
    %v351 = vpop.f32.mrb[0].mxu0
    %v352 = vpop.f32.mrb[0].mxu0
    %v353 = vadd.f32 0.0, %v352
    %v354 = vpop.f32.mrb[0].mxu0
    %355 = vmatprep.mubr.bf16.mxu0 0
    %356 = vmatmul.mubr.bf16.gmra.mrb[0].mxu0 %v193
    %v357 = vpop.f32.mrb[0].mxu0
    %v358 = vadd.f32 0.0, %v357
    %v359 = vpop.f32.mrb[0].mxu0
    %v360 = vpop.f32.mrb[0].mxu0
    %v361 = vadd.f32 0.0, %v360
    %v362 = vpop.f32.mrb[0].mxu0
    %363 = vmatprep.mubr.bf16.mxu0 0
    %364 = vmatmul.mubr.bf16.gmra.mrb[0].mxu0 %v194
    %v365 = vpop.f32.mrb[0].mxu0
    %v366 = vadd.f32 0.0, %v365
    %v367 = vpop.f32.mrb[0].mxu0
    %v368 = vpop.f32.mrb[0].mxu0
    %v369 = vadd.f32 0.0, %v368
    %v370 = vpop.f32.mrb[0].mxu0
    %371 = vdwg.mxu0
    %v372 = vadd.f32 %v195, %v310
    %v373 = vadd.f32 %v196, %v313
    %v374 = vadd.f32 %v197, %v318
    %v375 = vadd.f32 %v198, %v321
    %v376 = vadd.f32 %v199, %v326
    %v377 = vadd.f32 %v200, %v329
    %v378 = vadd.f32 %v201, %v334
    %v379 = vadd.f32 %v202, %v337
    %v380 = vadd.f32 %v203, %v342
    %v381 = vadd.f32 %v204, %v345
    %v382 = vadd.f32 %v205, %v350
    %v383 = vadd.f32 %v206, %v353
    %v384 = vadd.f32 %v207, %v358
    %v385 = vadd.f32 %v208, %v361
    %v386 = vadd.f32 %v209, %v366
    %v387 = vadd.f32 %v210, %v369
    %388 = vst [vmem:[#allocation2] sm:$0xff] %v372
    %389 = vst [vmem:[#allocation2 + $0x8] sm:$0xff] %v373
    %390 = vst [vmem:[#allocation2 + $0x10] sm:$0xff] %v374
    %391 = vst [vmem:[#allocation2 + $0x18] sm:$0xff] %v375
    %392 = vst [vmem:[#allocation2 + $0x20] sm:$0xff] %v376
    %393 = vst [vmem:[#allocation2 + $0x28] sm:$0xff] %v377
    %394 = vst [vmem:[#allocation2 + $0x30] sm:$0xff] %v378
    %395 = vst [vmem:[#allocation2 + $0x38] sm:$0xff] %v379
    %396 = vst [vmem:[#allocation2 + $0x40] sm:$0xff] %v380
    %397 = vst [vmem:[#allocation2 + $0x48] sm:$0xff] %v381
    %398 = vst [vmem:[#allocation2 + $0x50] sm:$0xff] %v382
    %399 = vst [vmem:[#allocation2 + $0x58] sm:$0xff] %v383
    %400 = vst [vmem:[#allocation2 + $0x60] sm:$0xff] %v384
    %401 = vst [vmem:[#allocation2 + $0x68] sm:$0xff] %v385
    %402 = vst [vmem:[#allocation2 + $0x70] sm:$0xff] %v386
    %403 = vst [vmem:[#allocation2 + $0x78] sm:$0xff] %v387
    // Predicated region
    $region30: #{tpu_custom_call.1} parent=1 // pred_check
      %p404 = pneg %p66
    $region31: #{tpu_custom_call.1} parent=1 // pred_check_branch
      %406 = sbr.rel (%p404) target = $region33
    $region32: #{tpu_custom_call.1} parent=1 // pred_region
      %s407 = sld [smem:[#allocation5]]
      %s408 = sadd.f32 %s407, 1.0
      %v409 = vld [vmem:[%s4] sm:$0xff]
      %v410 = vld [vmem:[%s4 + $0x8] sm:$0xff]
      %v411 = vld [vmem:[%s4 + $0x10] sm:$0xff]
      %v412 = vld [vmem:[%s4 + $0x18] sm:$0xff]
      %v413 = vld [vmem:[%s4 + $0x20] sm:$0xff]
      %v414 = vld [vmem:[%s4 + $0x28] sm:$0xff]
      %v415 = vld [vmem:[%s4 + $0x30] sm:$0xff]
      %v416 = vld [vmem:[%s4 + $0x38] sm:$0xff]
      %v417 = vld [vmem:[%s4 + $0x40] sm:$0xff]
      %v418 = vld [vmem:[%s4 + $0x48] sm:$0xff]
      %v419 = vld [vmem:[%s4 + $0x50] sm:$0xff]
      %v420 = vld [vmem:[%s4 + $0x58] sm:$0xff]
      %v421 = vld [vmem:[%s4 + $0x60] sm:$0xff]
      %v422 = vld [vmem:[%s4 + $0x68] sm:$0xff]
      %v423 = vld [vmem:[%s4 + $0x70] sm:$0xff]
      %v424 = vld [vmem:[%s4 + $0x78] sm:$0xff]
      %v425 = vstv %s408
      %v426 = vmul.f32 %v425, %v409
      %v427 = vmul.f32 %v425, %v410
      %v428 = vmul.f32 %v425, %v411
      %v429 = vmul.f32 %v425, %v412
      %v430 = vmul.f32 %v425, %v413
      %v431 = vmul.f32 %v425, %v414
      %v432 = vmul.f32 %v425, %v415
      %v433 = vmul.f32 %v425, %v416
      %v434 = vmul.f32 %v425, %v417
      %v435 = vmul.f32 %v425, %v418
      %v436 = vmul.f32 %v425, %v419
      %v437 = vmul.f32 %v425, %v420
      %v438 = vmul.f32 %v425, %v421
      %v439 = vmul.f32 %v425, %v422
      %v440 = vmul.f32 %v425, %v423
      %v441 = vmul.f32 %v425, %v424
      %v442 = vld [vmem:[#allocation2] sm:$0xff]
      %v443 = vld [vmem:[#allocation2 + $0x8] sm:$0xff]
      %v444 = vld [vmem:[#allocation2 + $0x10] sm:$0xff]
      %v445 = vld [vmem:[#allocation2 + $0x18] sm:$0xff]
      %v446 = vld [vmem:[#allocation2 + $0x20] sm:$0xff]
      %v447 = vld [vmem:[#allocation2 + $0x28] sm:$0xff]
      %v448 = vld [vmem:[#allocation2 + $0x30] sm:$0xff]
      %v449 = vld [vmem:[#allocation2 + $0x38] sm:$0xff]
      %v450 = vld [vmem:[#allocation2 + $0x40] sm:$0xff]
      %v451 = vld [vmem:[#allocation2 + $0x48] sm:$0xff]
      %v452 = vld [vmem:[#allocation2 + $0x50] sm:$0xff]
      %v453 = vld [vmem:[#allocation2 + $0x58] sm:$0xff]
      %v454 = vld [vmem:[#allocation2 + $0x60] sm:$0xff]
      %v455 = vld [vmem:[#allocation2 + $0x68] sm:$0xff]
      %v456 = vld [vmem:[#allocation2 + $0x70] sm:$0xff]
      %v457 = vld [vmem:[#allocation2 + $0x78] sm:$0xff]
      %v458 = vadd.f32 %v426, %v442
      %v459 = vadd.f32 %v427, %v443
      %v460 = vadd.f32 %v428, %v444
      %v461 = vadd.f32 %v429, %v445
      %v462 = vadd.f32 %v430, %v446
      %v463 = vadd.f32 %v431, %v447
      %v464 = vadd.f32 %v432, %v448
      %v465 = vadd.f32 %v433, %v449
      %v466 = vadd.f32 %v434, %v450
      %v467 = vadd.f32 %v435, %v451
      %v468 = vadd.f32 %v436, %v452
      %v469 = vadd.f32 %v437, %v453
      %v470 = vadd.f32 %v438, %v454
      %v471 = vadd.f32 %v439, %v455
      %v472 = vadd.f32 %v440, %v456
      %v473 = vadd.f32 %v441, %v457
      %474 = vst [vmem:[#allocation9] sm:$0xff] %v458
      %475 = vst [vmem:[#allocation9 + $0x8] sm:$0xff] %v459
      %476 = vst [vmem:[#allocation9 + $0x10] sm:$0xff] %v460
      %477 = vst [vmem:[#allocation9 + $0x18] sm:$0xff] %v461
      %478 = vst [vmem:[#allocation9 + $0x20] sm:$0xff] %v462
      %479 = vst [vmem:[#allocation9 + $0x28] sm:$0xff] %v463
      %480 = vst [vmem:[#allocation9 + $0x30] sm:$0xff] %v464
      %481 = vst [vmem:[#allocation9 + $0x38] sm:$0xff] %v465
      %482 = vst [vmem:[#allocation9 + $0x40] sm:$0xff] %v466
      %483 = vst [vmem:[#allocation9 + $0x48] sm:$0xff] %v467
      %484 = vst [vmem:[#allocation9 + $0x50] sm:$0xff] %v468
      %485 = vst [vmem:[#allocation9 + $0x58] sm:$0xff] %v469
      %486 = vst [vmem:[#allocation9 + $0x60] sm:$0xff] %v470
      %487 = vst [vmem:[#allocation9 + $0x68] sm:$0xff] %v471
      %488 = vst [vmem:[#allocation9 + $0x70] sm:$0xff] %v472
      %489 = vst [vmem:[#allocation9 + $0x78] sm:$0xff] %v473
    $region33: #{tpu_custom_call.1} parent=1 // pred_fallthru
      _
    // Predicated region
    $region34: #{tpu_custom_call.1} parent=1 // pred_check
      _
    $region35: #{tpu_custom_call.1} parent=1 // pred_check_branch
      %491 = sbr.rel (0) target = $region37
    $region36: #{tpu_custom_call.1} parent=1 // pred_region
      %s493 = ssub.s32 2048, 2048
      %494 = vsyncadd [#allocation8], %s493
      %s495 = sshll.u32 [#allocation9], 4
      %s496 = int_to_ptr.vmem [resolvable:$true] %s495
      %501 = dma.vmem_to_hbm [thread:$0]  %s496, 2048, %s6, [#allocation8], 128, 128, 8
    $region37: #{tpu_custom_call.1} parent=1 // pred_fallthru
      _
    // Predicated region
    $region38: #{tpu_custom_call.1} parent=1 // pred_check
      _
    $region39: #{tpu_custom_call.1} parent=1 // pred_check_branch
      %503 = sbr.rel (0) target = $region41
    $region40: #{tpu_custom_call.1} parent=1 // pred_region
      %504 = dma.done [#allocation8], 2048
    $region41: #{tpu_custom_call.1} parent=1 // pred_fallthru
      _
    %505 = vsyncpa [#allocation7], 1
    %506 = vsyncpa [#allocation8], 1

</llo_original>
